<compile_context>
chip_gen: v7x
topology: tpu7x:2x2x1
jax: 0.10.0
libtpu: 0.0.40
codegen_flags: <defaults>
</compile_context>

<pallas_src>
import functools

import jax
import jax.numpy as jnp
from jax.experimental import pallas as pl
from jax.experimental.pallas import tpu as pltpu


def _focal_loss_kernel(pred_ref, tgt_ref, out_ref, *, gamma, alpha,
                       ignore_index, hw, tile):
    j = pl.program_id(1)

    x = pred_ref[0].astype(jnp.float32)          # (C, T) logits, f32 compute
    t = tgt_ref[0]                               # (1, T) int32 labels
    C, T = x.shape

    # Numerically-stable softmax pieces over the class (sublane) axis.
    m = jnp.max(x, axis=0, keepdims=True)        # (1, T)
    z = x - m                                    # (C, T)
    ez = jnp.exp(z)                              # (C, T) -- the only C*T transcendentals
    s = jnp.sum(ez, axis=0, keepdims=True)       # (1, T)
    log_s = jnp.log(s)                           # (1, T)

    # One-hot gather of the target class, done on z / exp(z) so everything
    # downstream is per-pixel, not per (pixel, class).  ignore_index labels
    # match no class -> z_t = e_t = 0; those lanes are masked out below.
    cls = jax.lax.broadcasted_iota(jnp.int32, (C, T), 0)
    onehot = cls == t                            # (C, T) bool
    z_t = jnp.sum(jnp.where(onehot, z, 0.0), axis=0, keepdims=True)   # (1, T)
    e_t = jnp.sum(jnp.where(onehot, ez, 0.0), axis=0, keepdims=True)  # (1, T)

    p_t = e_t / s                                # softmax prob of target class
    log_p_t = z_t - log_s                        # log-softmax of target class

    one_minus = 1.0 - p_t
    if gamma == 2.0:                             # default config: pure VPU multiply
        w = one_minus * one_minus
    elif gamma == 1.0:
        w = one_minus
    elif gamma == 0.0:
        w = jnp.ones_like(one_minus)
    else:
        w = jnp.power(one_minus, jnp.float32(gamma))

    focal_t = (-alpha) * w * log_p_t             # (1, T)

    # Mask ignored pixels and the out-of-bounds lanes of the ragged last tile.
    pix = j * tile + jax.lax.broadcasted_iota(jnp.int32, (1, T), 1)
    valid = (t != ignore_index) & (pix < hw)
    loss_t = jnp.where(valid, focal_t, 0.0)

    partial = jnp.sum(loss_t)                    # one cross-lane reduce per big tile

    # Broadcast the per-tile scalar over a lane/sublane-aligned (8,128) block.
    # The wrapper reads [..., 0, 0]; broadcasting is cheaper than iota+mask.
    out_ref[...] = jnp.broadcast_to(partial, (1, 1, 8, 128))


def focal_loss_2d(pred, target, *, gamma=2.0, loss_weight=1.0,
                  ignore_index=255, reduction='mean', tile_pixels=8192):
    """Pallas implementation of FocalLoss2d.forward (reduction='mean'/'sum')."""
    B, C, H, W = pred.shape
    hw = H * W
    n = B * hw

    # Free views -- no transpose, no pad, no dtype cast of the logits in HBM.
    pred3 = pred.reshape(B, C, hw)
    tgt3 = target.reshape(B, 1, hw).astype(jnp.int32)   # tiny array; cast is cheap

    # Pixel tile: full row if it fits, else a multiple of 128 (ragged last tile
    # is masked in-kernel, no HBM padding).
    if hw <= tile_pixels:
        t_pix = hw
    else:
        t_pix = max(128, (tile_pixels // 128) * 128)
    num_j = pl.cdiv(hw, t_pix)

    if reduction not in ('mean', 'sum'):
        # TODO(synk): reduction='none' (per-pixel loss map) not implemented;
        # the module default ('mean') and 'sum' are supported.
        raise NotImplementedError(reduction)

    kernel = functools.partial(
        _focal_loss_kernel,
        gamma=float(gamma),
        alpha=float(loss_weight),
        ignore_index=int(ignore_index),
        hw=int(hw),
        tile=int(t_pix),
    )

    partials = pl.pallas_call(
        kernel,
        out_shape=jax.ShapeDtypeStruct((B, num_j, 8, 128), jnp.float32),
        grid_spec=pltpu.PrefetchScalarGridSpec(
            num_scalar_prefetch=0,
            grid=(B, num_j),
            in_specs=[
                pl.BlockSpec((1, C, t_pix), lambda b, j: (b, 0, j)),  # logits tile
                pl.BlockSpec((1, 1, t_pix), lambda b, j: (b, 0, j)),  # labels tile
            ],
            out_specs=pl.BlockSpec((1, 1, 8, 128), lambda b, j: (b, j, 0, 0)),
        ),
        compiler_params=pltpu.CompilerParams(
            dimension_semantics=("parallel", "parallel")),
    )(pred3, tgt3)

    total = jnp.sum(partials[:, :, 0, 0])        # tiny reduction in plain XLA
    if reduction == 'mean':
        return total / jnp.float32(n)
    return total


def _focal_loss_ref(pred, target, gamma=2.0, alpha=1.0, ignore_index=255):
    """Pure-JAX reference mirroring the PyTorch forward exactly."""
    B, C, H, W = pred.shape
    t = jnp.where(target == ignore_index, C, target).astype(jnp.int32)
    onehot = jax.nn.one_hot(t, C + 1, axis=1)[:, :C]        # (B, C, H, W)
    prob = jax.nn.softmax(pred, axis=1)
    log_prob = jax.nn.log_softmax(pred, axis=1)
    w = jnp.power(1.0 - prob, gamma)
    focal = -alpha * w * log_prob
    loss = jnp.einsum('bchw,bchw->bhw', onehot, focal)
    return jnp.mean(loss)


if __name__ == "__main__":
    key = jax.random.PRNGKey(0)
    k1, k2, k3 = jax.random.split(key, 3)

    B, C, H, W = 2, 4, 16, 16
    pred = jax.random.normal(k1, (B, C, H, W), dtype=jnp.float32)
    target = jax.random.randint(k2, (B, H, W), 0, C, dtype=jnp.int32)
    # Sprinkle some ignore_index pixels to exercise the masking path.
    ignore_mask = jax.random.bernoulli(k3, 0.1, (B, H, W))
    target = jnp.where(ignore_mask, 255, target)

    loss = focal_loss_2d(pred, target, gamma=2.0, loss_weight=1.0,
                         ignore_index=255, reduction='mean')
    jax.block_until_ready(loss)

    ref = _focal_loss_ref(pred, target, gamma=2.0, alpha=1.0, ignore_index=255)
    assert abs(float(loss) - float(ref)) < 1e-5, (float(loss), float(ref))

    print("KERNEL_OK")
</pallas_src>

<mosaic_0001>
module attributes {stable_mosaic.version = 11 : i64} {
  func.func @_focal_loss_kernel(%arg0: i32, %arg1: i32, %arg2: memref<1x4x256xf32, #tpu.memory_space<vmem>>, %arg3: memref<1x1x256xi32, #tpu.memory_space<vmem>>, %arg4: memref<1x1x8x128xf32, #tpu.memory_space<vmem>>) attributes {dimension_semantics = [#tpu.dimension_semantics<parallel>, #tpu.dimension_semantics<parallel>], iteration_bounds = array<i64: 2, 1>, scalar_prefetch = 0 : i64, scratch_operands = 0 : i64, tpu.core_type = #tpu.core_type<tc>, window_params = [{transform_indices = @transform_0, window_bounds = array<i64: 1, 4, 256>}, {transform_indices = @transform_1, window_bounds = array<i64: 1, 1, 256>}, {transform_indices = @transform_2, window_bounds = array<i64: 1, 1, 8, 128>}]} {
    %c0 = arith.constant 0 : index
    %c0_0 = arith.constant 0 : index
    %c0_1 = arith.constant 0 : index
    %0 = vector.load %arg2[%c0, %c0_0, %c0_1] : memref<1x4x256xf32, #tpu.memory_space<vmem>>, vector<1x4x256xf32>
    %1 = vector.shape_cast %0 : vector<1x4x256xf32> to vector<4x256xf32>
    %c0_2 = arith.constant 0 : index
    %c0_3 = arith.constant 0 : index
    %c0_4 = arith.constant 0 : index
    %2 = vector.load %arg3[%c0_2, %c0_3, %c0_4] : memref<1x1x256xi32, #tpu.memory_space<vmem>>, vector<1x1x256xi32>
    %3 = vector.shape_cast %2 : vector<1x1x256xi32> to vector<1x256xi32>
    %cst = arith.constant dense<0xFF800000> : vector<256xf32>
    %4 = vector.multi_reduction <maximumf>, %1, %cst [0] : vector<4x256xf32> to vector<256xf32>
    %5 = vector.shape_cast %4 : vector<256xf32> to vector<1x256xf32>
    %6 = vector.broadcast %5 : vector<1x256xf32> to vector<4x256xf32>
    %7 = arith.subf %1, %6 : vector<4x256xf32>
    %8 = math.exp %7 : vector<4x256xf32>
    %cst_5 = arith.constant dense<0.000000e+00> : vector<256xf32>
    %9 = vector.multi_reduction <add>, %8, %cst_5 [0] : vector<4x256xf32> to vector<256xf32>
    %10 = vector.shape_cast %9 : vector<256xf32> to vector<1x256xf32>
    %11 = math.log %10 : vector<1x256xf32>
    %12 = tpu.iota {dimensions = array<i32: 0>} : vector<4x256xi32>
    %13 = vector.broadcast %3 : vector<1x256xi32> to vector<4x256xi32>
    %14 = arith.cmpi eq, %12, %13 : vector<4x256xi32>
    %cst_6 = arith.constant 0.000000e+00 : f32
    %15 = vector.broadcast %cst_6 : f32 to vector<4x256xf32>
    %16 = arith.select %14, %7, %15 : vector<4x256xi1>, vector<4x256xf32>
    %cst_7 = arith.constant dense<0.000000e+00> : vector<256xf32>
    %17 = vector.multi_reduction <add>, %16, %cst_7 [0] : vector<4x256xf32> to vector<256xf32>
    %18 = vector.shape_cast %17 : vector<256xf32> to vector<1x256xf32>
    %cst_8 = arith.constant 0.000000e+00 : f32
    %19 = vector.broadcast %cst_8 : f32 to vector<4x256xf32>
    %20 = arith.select %14, %8, %19 : vector<4x256xi1>, vector<4x256xf32>
    %cst_9 = arith.constant dense<0.000000e+00> : vector<256xf32>
    %21 = vector.multi_reduction <add>, %20, %cst_9 [0] : vector<4x256xf32> to vector<256xf32>
    %22 = vector.shape_cast %21 : vector<256xf32> to vector<1x256xf32>
    %23 = arith.divf %22, %10 : vector<1x256xf32>
    %24 = arith.subf %18, %11 : vector<1x256xf32>
    %cst_10 = arith.constant 1.000000e+00 : f32
    %25 = vector.broadcast %cst_10 : f32 to vector<1x256xf32>
    %26 = arith.subf %25, %23 : vector<1x256xf32>
    %27 = arith.mulf %26, %26 : vector<1x256xf32>
    %cst_11 = arith.constant -1.000000e+00 : f32
    %28 = vector.broadcast %cst_11 : f32 to vector<1x256xf32>
    %29 = arith.mulf %28, %27 : vector<1x256xf32>
    %30 = arith.mulf %29, %24 : vector<1x256xf32>
    %c256_i32 = arith.constant 256 : i32
    %31 = arith.muli %arg1, %c256_i32 : i32
    %32 = tpu.iota {dimensions = array<i32: 1>} : vector<1x256xi32>
    %33 = vector.broadcast %31 : i32 to vector<1x256xi32>
    %34 = arith.addi %33, %32 : vector<1x256xi32>
    %c255_i32 = arith.constant 255 : i32
    %35 = vector.broadcast %c255_i32 : i32 to vector<1x256xi32>
    %36 = arith.cmpi ne, %3, %35 : vector<1x256xi32>
    %c256_i32_12 = arith.constant 256 : i32
    %37 = vector.broadcast %c256_i32_12 : i32 to vector<1x256xi32>
    %38 = arith.cmpi slt, %34, %37 : vector<1x256xi32>
    %39 = arith.andi %36, %38 : vector<1x256xi1>
    %cst_13 = arith.constant 0.000000e+00 : f32
    %40 = vector.broadcast %cst_13 : f32 to vector<1x256xf32>
    %41 = arith.select %39, %30, %40 : vector<1x256xi1>, vector<1x256xf32>
    %42 = vector.shape_cast %41 : vector<1x256xf32> to vector<1x1x256xf32>
    %cst_14 = arith.constant dense<0.000000e+00> : vector<1xf32>
    %43 = vector.multi_reduction <add>, %42, %cst_14 [1, 2] : vector<1x1x256xf32> to vector<1xf32>
    %44 = vector.shape_cast %43 : vector<1xf32> to vector<1x1x1xf32>
    %45 = vector.extract %44[0, 0, 0] : f32 from vector<1x1x1xf32>
    %46 = vector.broadcast %45 : f32 to vector<1x1x8x128xf32>
    %c0_15 = arith.constant 0 : index
    %c0_16 = arith.constant 0 : index
    %c0_17 = arith.constant 0 : index
    %c0_18 = arith.constant 0 : index
    %47 = vector.load %arg4[%c0_15, %c0_16, %c0_17, %c0_18] : memref<1x1x8x128xf32, #tpu.memory_space<vmem>>, vector<1x1x8x128xf32>
    tpu.vector_store %arg4[%c0_15, %c0_16, %c0_17, %c0_18], %46 {strides = array<i32>} : memref<1x1x8x128xf32, #tpu.memory_space<vmem>>, vector<1x1x8x128xf32>,
    return
  }
  func.func @transform_0(%arg0: i32, %arg1: i32) -> (i32, i32, i32) {
    %c0_i32 = arith.constant 0 : i32
    %c0_i32_0 = arith.constant 0 : i32
    return %arg0, %c0_i32, %arg1 : i32, i32, i32
  }
  func.func @transform_1(%arg0: i32, %arg1: i32) -> (i32, i32, i32) {
    %c0_i32 = arith.constant 0 : i32
    %c0_i32_0 = arith.constant 0 : i32
    return %arg0, %c0_i32, %arg1 : i32, i32, i32
  }
  func.func @transform_2(%arg0: i32, %arg1: i32) -> (i32, i32, i32, i32) {
    %c0_i32 = arith.constant 0 : i32
    %c0_i32_0 = arith.constant 0 : i32
    %c0_i32_1 = arith.constant 0 : i32
    return %arg0, %arg1, %c0_i32, %c0_i32_0 : i32, i32, i32, i32
  }
}

</mosaic_0001>

<llo_original>
// kernel: tpu_custom_call.1
$region0: #{tpu_custom_call.1}
  #allocation0 [shape = 'u32[]', space=smem, size = 0x4, offset = 0x4, fixed_abs, tag = 'smem constant byte address 0x4 - core index']
  #allocation1 [shape = 'u32[144,128]{1,0:T(1,128)}', space=vmem, size = 0x12000, scoped, tag = 'internal scratch']
  %s0 = inlined_call_operand.hbm [shape: f32[2,4,256], index: 0, kind: input, shape index: {}]
  %s1 = inlined_call_operand.hbm [shape: s32[2,1,256], index: 1, kind: input, shape index: {}]
  %s2 = inlined_call_operand.hbm [shape: f32[2,1,8,128], index: 2, kind: output, shape index: {}]
  %s3 = sld [smem:[#allocation0]]
  $region49: #{tpu_custom_call.1} parent=0
    _
  %s5 = ssub.s32 1, %s3
  %s6 = scalar_select 0, %s5, %s3
  $region1: #{tpu_custom_call.1} parent=0
    #allocation2 [shape = 'u8[8192]{0}', space=vmem, size = 0x2000, scoped, tag = 'input window, operand 0']
    #allocation3 [shape = 's32[2]{0}', space=sflag, size = 0x8, scoped, tag = 'scoped memory for tpu_custom_call.1']
    #allocation4 [shape = 's32[2]{0}', space=sflag, size = 0x8, scoped, tag = 'scoped memory for tpu_custom_call.1']
    #allocation5 [shape = 'u8[2048]{0}', space=vmem, size = 0x800, scoped, tag = 'input window, operand 1']
    #allocation6 [shape = 's32[2]{0}', space=sflag, size = 0x8, scoped, tag = 'scoped memory for tpu_custom_call.1']
    #allocation7 [shape = 'u8[8192]{0}', space=vmem, size = 0x2000, scoped, tag = 'output window, operand 0']
    %7 = vsyncpa [#allocation3], 0
    %s8 = scalar_lea.sflag [#allocation3], 1
    %9 = vsyncpa %s8, 0
    %10 = vsyncpa [#allocation6], 0
    %s11 = scalar_lea.sflag [#allocation6], 1
    %12 = vsyncpa %s11, 0
    %13 = vsyncpa [#allocation4], 0
    %s14 = scalar_lea.sflag [#allocation4], 1
    %15 = vsyncpa %s14, 0
    loop: start=0, step=1, limit=4
    $region2: #{tpu_custom_call.1} parent=1 // loop_pre_header
      _
    $region3: #{tpu_custom_call.1} parent=1 // loop_header
      %s17 = sphi 0, %s21
      %p18 = scmp.ge.s32.totalorder %s17, 4
      %s24 = sphi 0, %s36
      %s25 = sphi 0, %s32
      %s26 = sphi 0, %s24
      %s27 = sphi 0, %s25
      %s28 = sphi 0, %s26
      %s29 = sphi 0, %s27
      %s41 = sphi 0, %s43
      %s44 = sphi 0, %s41
      %s45 = sphi 0, %s44
      %s61 = sphi 0, %s45
      %s69 = sphi 0, %s71
      %s72 = sphi 0, %s69
      %s73 = sphi 0, %s72
      %s89 = sphi 0, %s73
      %s97 = sphi 0, %s99
      %s100 = sphi 0, %s97
      %s101 = sphi 0, %s100
      %s117 = sphi 0, %s101
    $region4: #{tpu_custom_call.1} parent=1 // loop_header_branch
      %20 = sbr.rel (%p18) target = $region8
    $region5: #{tpu_custom_call.1} parent=1 // loop_body
      %s22 = ssub.s32 %s17, 1
      %s23 = ssub.s32 %s17, 2
      %s30 = sadd.s32 1, %s25
      %p31 = scmp.ge.s32.totalorder %s30, 1
      %s32 = scalar_select %p31, 0, %s30
      %s33 = sadd.s32 1, %s24
      %s34 = scalar_select %p31, %s33, %s24
      %p35 = scmp.ge.s32.totalorder %s34, 2
      %s36 = scalar_select %p35, 0, %s34
      %s37 = ssub.s32 %s24, %s36
      %s38 = ssub.s32 %s25, %s32
      %s39 = sor.u32 %s37, %s38
      %p40 = scmp.eq.s32.totalorder %s39, 0
      %s42 = sadd.s32 %s41, 1
      %s43 = scalar_select %p40, %s41, %s42
      %p46 = pneg %p40
      %p47 = scmp.eq.s32.totalorder %s17, 1
      %p48 = por %p46, %p47
      %p49 = scmp.ne.s32.totalorder %s41, %s44
      %p50 = scmp.eq.s32.totalorder %s17, 0
      %p51 = por %p49, %p50
      %p52 = scmp.ne.s32.totalorder %s41, %s44
      %p53 = scmp.eq.s32.totalorder %s22, 1
      %p54 = por %p52, %p53
      %p55 = scmp.ne.s32.totalorder %s44, %s45
      %p56 = scmp.eq.s32.totalorder %s22, 0
      %p57 = por %p55, %p56
      %p58 = scmp.ne.s32.totalorder %s44, %s45
      %p59 = scmp.eq.s32.totalorder %s23, 1
      %p60 = por %p58, %p59
      %p62 = scmp.ne.s32.totalorder %s45, %s61
      %p63 = scmp.eq.s32.totalorder %s23, 0
      %p64 = por %p62, %p63
      %s65 = ssub.s32 %s24, %s36
      %s66 = ssub.s32 %s25, %s32
      %s67 = sor.u32 %s65, %s66
      %p68 = scmp.eq.s32.totalorder %s67, 0
      %s70 = sadd.s32 %s69, 1
      %s71 = scalar_select %p68, %s69, %s70
      %p74 = pneg %p68
      %p75 = scmp.eq.s32.totalorder %s17, 1
      %p76 = por %p74, %p75
      %p77 = scmp.ne.s32.totalorder %s69, %s72
      %p78 = scmp.eq.s32.totalorder %s17, 0
      %p79 = por %p77, %p78
      %p80 = scmp.ne.s32.totalorder %s69, %s72
      %p81 = scmp.eq.s32.totalorder %s22, 1
      %p82 = por %p80, %p81
      %p83 = scmp.ne.s32.totalorder %s72, %s73
      %p84 = scmp.eq.s32.totalorder %s22, 0
      %p85 = por %p83, %p84
      %p86 = scmp.ne.s32.totalorder %s72, %s73
      %p87 = scmp.eq.s32.totalorder %s23, 1
      %p88 = por %p86, %p87
      %p90 = scmp.ne.s32.totalorder %s73, %s89
      %p91 = scmp.eq.s32.totalorder %s23, 0
      %p92 = por %p90, %p91
      %s93 = ssub.s32 %s24, %s36
      %s94 = ssub.s32 %s25, %s32
      %s95 = sor.u32 %s93, %s94
      %p96 = scmp.eq.s32.totalorder %s95, 0
      %s98 = sadd.s32 %s97, 1
      %s99 = scalar_select %p96, %s97, %s98
      %p102 = pneg %p96
      %p103 = scmp.eq.s32.totalorder %s17, 1
      %p104 = por %p102, %p103
      %p105 = scmp.ne.s32.totalorder %s97, %s100
      %p106 = scmp.eq.s32.totalorder %s17, 0
      %p107 = por %p105, %p106
      %p108 = scmp.ne.s32.totalorder %s97, %s100
      %p109 = scmp.eq.s32.totalorder %s22, 1
      %p110 = por %p108, %p109
      %p111 = scmp.ne.s32.totalorder %s100, %s101
      %p112 = scmp.eq.s32.totalorder %s22, 0
      %p113 = por %p111, %p112
      %p114 = scmp.ne.s32.totalorder %s100, %s101
      %p115 = scmp.eq.s32.totalorder %s23, 1
      %p116 = por %p114, %p115
      %p118 = scmp.ne.s32.totalorder %s101, %s117
      %p119 = scmp.eq.s32.totalorder %s23, 0
      %p120 = por %p118, %p119
      %p121 = scmp.le.s32.totalorder 1, %s17
      %p122 = scmp.lt.s32.totalorder %s17, 3
      %p123 = pnand %p121, %p122
      %p124 = pneg %p123
      // Predicated region
      $region9: #{tpu_custom_call.1} parent=5 // pred_check
        _
      $region10: #{tpu_custom_call.1} parent=5 // pred_check_branch
        %126 = sbr.rel (%p123) target = $region12
      $region11: #{tpu_custom_call.1} parent=5 // pred_region
        %s127 = ssub.s32 %s17, 1
      $region12: #{tpu_custom_call.1} parent=5 // pred_fallthru
        _
      %p128 = scmp.lt.s32.totalorder %s17, 2
      // Predicated region
      $region13: #{tpu_custom_call.1} parent=5 // pred_check
        %p129 = pneg %p128
      $region14: #{tpu_custom_call.1} parent=5 // pred_check_branch
        %131 = sbr.rel (%p129) target = $region16
      $region15: #{tpu_custom_call.1} parent=5 // pred_region
        // Predicated region
        $region17: #{tpu_custom_call.1} parent=15 // pred_check
          %p132 = pneg %p51
        $region18: #{tpu_custom_call.1} parent=15 // pred_check_branch
          %134 = sbr.rel (%p132) target = $region20
        $region19: #{tpu_custom_call.1} parent=15 // pred_region
          %s135 = sand.u32 %s41, 1
          %s136 = scalar_lea.sflag [#allocation3], %s135
          %s137 = sand.u32 %s41, 1
          %s138 = smul.addr %s137, 8
          %s139 = scalar_lea.vmem [#allocation2], %s138
          %s140 = smul.u32 2, %s25
          %s142 = ssub.s32 128, 128
          %143 = vsyncadd %s136, %s142
          %s144 = smul.addr %s24, 2
          %s145 = sadd.s32 %s140, %s144
          %s146 = smul.addr %s145, 64
          %s147 = scalar_lea.hbm %s0, %s146
          %s149 = sshll.u32 %s139, 4
          %s150 = int_to_ptr.vmem [resolvable:$true] %s149
          %152 = dma.hbm_to_vmem [thread:$0]  %s147, 128, %s150, %s136
        $region20: #{tpu_custom_call.1} parent=15 // pred_fallthru
          _
        // Predicated region
        $region21: #{tpu_custom_call.1} parent=15 // pred_check
          %p153 = pneg %p79
        $region22: #{tpu_custom_call.1} parent=15 // pred_check_branch
          %155 = sbr.rel (%p153) target = $region24
        $region23: #{tpu_custom_call.1} parent=15 // pred_region
          %s156 = sand.u32 %s69, 1
          %s157 = scalar_lea.sflag [#allocation6], %s156
          %s158 = sand.u32 %s69, 1
          %s159 = smul.addr %s158, 2
          %s160 = scalar_lea.vmem [#allocation5], %s159
          %s161 = smul.u32 2, %s25
          %s163 = ssub.s32 32, 32
          %164 = vsyncadd %s157, %s163
          %s165 = smul.addr %s24, 2
          %s166 = sadd.s32 %s161, %s165
          %s167 = smul.addr %s166, 16
          %s168 = scalar_lea.hbm %s1, %s167
          %s170 = sshll.u32 %s160, 4
          %s171 = int_to_ptr.vmem [resolvable:$true] %s170
          %173 = dma.hbm_to_vmem [thread:$0]  %s168, 32, %s171, %s157
        $region24: #{tpu_custom_call.1} parent=15 // pred_fallthru
          _
      $region16: #{tpu_custom_call.1} parent=5 // pred_fallthru
        _
      %p174 = scmp.le.s32.totalorder 1, %s17
      %p175 = scmp.lt.s32.totalorder %s17, 3
      %p176 = pnand %p174, %p175
      %p177 = pneg %p176
      // Predicated region
      $region25: #{tpu_custom_call.1} parent=5 // pred_check
        _
      $region26: #{tpu_custom_call.1} parent=5 // pred_check_branch
        %179 = sbr.rel (%p176) target = $region28
      $region27: #{tpu_custom_call.1} parent=5 // pred_region
        %s180 = ssub.s32 %s17, 1
        %s181 = sand.u32 %s44, 1
        %s182 = scalar_lea.sflag [#allocation3], %s181
        %s183 = sand.u32 %s44, 1
        %s184 = smul.addr %s183, 8
        %s185 = scalar_lea.vmem [#allocation2], %s184
        // Predicated region
        $region29: #{tpu_custom_call.1} parent=27 // pred_check
          %p186 = pneg %p57
        $region30: #{tpu_custom_call.1} parent=27 // pred_check_branch
          %188 = sbr.rel (%p186) target = $region32
        $region31: #{tpu_custom_call.1} parent=27 // pred_region
          %189 = dma.done %s182, 128
        $region32: #{tpu_custom_call.1} parent=27 // pred_fallthru
          _
        %s190 = sand.u32 %s72, 1
        %s191 = scalar_lea.sflag [#allocation6], %s190
        %s192 = sand.u32 %s72, 1
        %s193 = smul.addr %s192, 2
        %s194 = scalar_lea.vmem [#allocation5], %s193
        // Predicated region
        $region33: #{tpu_custom_call.1} parent=27 // pred_check
          %p195 = pneg %p85
        $region34: #{tpu_custom_call.1} parent=27 // pred_check_branch
          %197 = sbr.rel (%p195) target = $region36
        $region35: #{tpu_custom_call.1} parent=27 // pred_region
          %198 = dma.done %s191, 32
        $region36: #{tpu_custom_call.1} parent=27 // pred_fallthru
          _
        %s199 = sand.u32 %s44, 1
        %s200 = scalar_lea.sflag [#allocation3], %s199
        %s201 = sand.u32 %s44, 1
        %s202 = smul.addr %s201, 8
        %s203 = scalar_lea.vmem [#allocation2], %s202
        %p204 = pneg %p57
        %p205 = pneg %p54
        %s206 = sand.u32 %s72, 1
        %s207 = scalar_lea.sflag [#allocation6], %s206
        %s208 = sand.u32 %s72, 1
        %s209 = smul.addr %s208, 2
        %s210 = scalar_lea.vmem [#allocation5], %s209
        %p211 = pneg %p85
        %p212 = pneg %p82
        %p213 = pneg %p113
        %p214 = pneg %p110
        %s215 = sand.u32 %s100, 1
        %s216 = scalar_lea.sflag [#allocation4], %s215
        %s217 = sand.u32 %s100, 1
        %s218 = smul.addr %s217, 8
        %s219 = scalar_lea.vmem [#allocation7], %s218
        %s220 = smul.u32 2, %s27
        %s221 = smul.u32 2, %s27
        %v222 = vld [vmem:[%s185] sm:$0xff]
        %v223 = vld [vmem:[%s194] sm:$0x3]
        %v225 = vcombine.high %v222, %v222
        %vm227 = vcmask 1043456
        %v228 = vsel %vm227, %v222, -inf
        %v229 = vrot.slane %v228, 4
        %v230 = vmax.f32 %v228, %v229
        %v231 = vrot.slane %v230, 2
        %v232 = vmax.f32 %v230, %v231
        %v233 = vrot.slane %v232, 1
        %v234 = vmax.f32 %v232, %v233
        %v235 = vsel %vm227, %v225, -inf
        %v236 = vrot.slane %v235, 4
        %v237 = vmax.f32 %v235, %v236
        %v238 = vrot.slane %v237, 2
        %v239 = vmax.f32 %v237, %v238
        %v240 = vrot.slane %v239, 1
        %v241 = vmax.f32 %v239, %v240
        %v244 = vcombine.low %v234, %v241
        %v246 = vsub.f32 %v222, %v244
        %v247 = vmul.f32 %v246, 1.442695
        %v248 = vpow.pop %v247
        %v250 = vcombine.high %v248, %v248
        %v252 = vsel %vm227, %v248, 0.0
        %v253 = vrot.slane %v252, 4
        %v254 = vadd.f32 %v252, %v253
        %v255 = vrot.slane %v254, 2
        %v256 = vadd.f32 %v254, %v255
        %v257 = vrot.slane %v256, 1
        %v258 = vadd.f32 %v256, %v257
        %v259 = vsel %vm227, %v250, 0.0
        %v260 = vrot.slane %v259, 4
        %v261 = vadd.f32 %v259, %v260
        %v262 = vrot.slane %v261, 2
        %v263 = vadd.f32 %v261, %v262
        %v264 = vrot.slane %v263, 1
        %v265 = vadd.f32 %v263, %v264
        %v266 = vlog2.pop %v258
        %v267 = vmul.f32 %v266, 0.6931472
        %v268 = vlog2.pop %v265
        %v269 = vmul.f32 %v268, 0.6931472
        %v270 = vlaneseq
        %v271 = vshrl.u32 %v270, 7
        %v272 = vlaneseq
        %v273 = vshrl.u32 %v272, 7
        %v274 = vsub.s32 0, %v273
        %v275 = vrot.slane %v223, %v274
        %v276 = vlaneseq
        %v277 = vshrl.u32 %v276, 7
        %v278 = vsub.s32 1, %v277
        %v279 = vrot.slane %v223, %v278
        %vm280 = vcmp.eq.s32.totalorder %v271, %v275
        %vm281 = vcmp.eq.s32.totalorder %v271, %v279
        %v283 = vcombine.high %v246, %v246
        %v285 = vsel %vm280, %v246, 0.0
        %v286 = vsel %vm281, %v283, 0.0
        %v287 = vsel %vm227, %v285, 0.0
        %v288 = vrot.slane %v287, 4
        %v289 = vadd.f32 %v287, %v288
        %v290 = vrot.slane %v289, 2
        %v291 = vadd.f32 %v289, %v290
        %v292 = vrot.slane %v291, 1
        %v293 = vadd.f32 %v291, %v292
        %v294 = vsel %vm227, %v286, 0.0
        %v295 = vrot.slane %v294, 4
        %v296 = vadd.f32 %v294, %v295
        %v297 = vrot.slane %v296, 2
        %v298 = vadd.f32 %v296, %v297
        %v299 = vrot.slane %v298, 1
        %v300 = vadd.f32 %v298, %v299
        %v301 = vsel %vm280, %v248, 0.0
        %v302 = vsel %vm281, %v250, 0.0
        %v303 = vsel %vm227, %v301, 0.0
        %v304 = vrot.slane %v303, 4
        %v305 = vadd.f32 %v303, %v304
        %v306 = vrot.slane %v305, 2
        %v307 = vadd.f32 %v305, %v306
        %v308 = vrot.slane %v307, 1
        %v309 = vadd.f32 %v307, %v308
        %v310 = vsel %vm227, %v302, 0.0
        %v311 = vrot.slane %v310, 4
        %v312 = vadd.f32 %v310, %v311
        %v313 = vrot.slane %v312, 2
        %v314 = vadd.f32 %v312, %v313
        %v315 = vrot.slane %v314, 1
        %v316 = vadd.f32 %v314, %v315
        %v317 = vrcp.pop %v258
        %v318 = vmul.f32 %v309, %v317
        %v319 = vrcp.pop %v265
        %v320 = vmul.f32 %v316, %v319
        %v321 = vsub.f32 %v293, %v267
        %v322 = vsub.f32 %v300, %v269
        %v323 = vsub.f32 1.0, %v318
        %v324 = vsub.f32 1.0, %v320
        %v325 = vmul.f32 %v323, %v323
        %v326 = vmul.f32 %v324, %v324
        %v327 = vmul.f32 %v325, -1.0
        %v328 = vmul.f32 %v326, -1.0
        %v329 = vmul.f32 %v327, %v321
        %v330 = vmul.f32 %v328, %v322
        %s331 = smul.u32 %s27, 256
        %v332 = vlaneseq
        %v333 = vand.u32 %v332, 127
        %v334 = vadd.s32 %v333, 128
        %v335 = vstv %s331
        %v336 = vadd.s32 %v335, %v333
        %v337 = vadd.s32 %v335, %v334
        %vm338 = vcmp.ne.s32.totalorder %v223, 255
        %vm339 = vcmp.lt.s32.totalorder %v336, 256
        %vm340 = vcmp.lt.s32.totalorder %v337, 256
        %v341 = vsel %vm339, 1, 0
        %v342 = vsel %vm340, 1, 0
        %v343 = vcombine.low %v341, %v342
        %v345 = vunpack.c.l.s4 1966171168
        %v346 = vunpack.c.0.s8 %v345
        %v347 = vlaneseq
        %v348 = vshrl.u32 %v347, 7
        %v349 = vsub.s32 %v346, %v348
        %v350 = vrot.slane %v343, %v349
        %v352 = vunpack.c.l.s4 1966171168
        %v353 = vunpack.c.0.s8 %v352
        %v354 = vlaneseq
        %v355 = vshrl.u32 %v354, 7
        %v356 = vsub.s32 %v353, %v355
        %v357 = vrot.slane %v350, %v356
        %vm358 = vcmp.ne.s32.totalorder %v357, 0
        %vm359 = vmand %vm338, %vm358
        %v362 = vcombine.low %v329, %v330
        %v364 = vunpack.c.l.s4 1966171168
        %v365 = vunpack.c.0.s8 %v364
        %v366 = vlaneseq
        %v367 = vshrl.u32 %v366, 7
        %v368 = vsub.s32 %v365, %v367
        %v369 = vrot.slane %v362, %v368
        %v371 = vunpack.c.l.s4 1966171168
        %v372 = vunpack.c.0.s8 %v371
        %v373 = vlaneseq
        %v374 = vshrl.u32 %v373, 7
        %v375 = vsub.s32 %v372, %v374
        %v376 = vrot.slane %v369, %v375
        %v378 = vsel %vm359, %v376, 0.0
        %v380 = vlaneseq
        %v381 = vshrl.u32 %v380, 7
        %v382 = vsub.s32 0, %v381
        %v383 = vrot.slane %v378, %v382
        %v384 = vlaneseq
        %v385 = vshrl.u32 %v384, 7
        %v386 = vsub.s32 1, %v385
        %v387 = vrot.slane %v378, %v386
        %vm390 = vcmask 1040384
        %v391 = vsel %vm390, %v383, 0.0
        %v392 = vsel %vm390, %v387, 0.0
        %v393 = vadd.f32 %v391, %v392
        %394 = vadd.xlane.f32.xlu0 %v393
        %v395 = vpop.xlane.xlu0 %394
        %v396 = vrot.slane %v395, 4
        %v397 = vadd.f32 %v395, %v396
        %v398 = vrot.slane %v397, 2
        %v399 = vadd.f32 %v397, %v398
        %v400 = vrot.slane %v399, 1
        %v401 = vadd.f32 %v399, %v400
        %s402 = vtos %v401
        %v403 = vstv %s402
        %404 = vst [vmem:[%s219] sm:$0xff] %v403
        %s405 = sand.u32 %s100, 1
        %s406 = scalar_lea.sflag [#allocation4], %s405
        %s407 = sand.u32 %s100, 1
        %s408 = smul.addr %s407, 8
        %s409 = scalar_lea.vmem [#allocation7], %s408
        // Predicated region
        $region37: #{tpu_custom_call.1} parent=27 // pred_check
          %p410 = pneg %p110
        $region38: #{tpu_custom_call.1} parent=27 // pred_check_branch
          %412 = sbr.rel (%p410) target = $region40
        $region39: #{tpu_custom_call.1} parent=27 // pred_region
          %s414 = ssub.s32 128, 128
          %415 = vsyncadd %s406, %s414
          %s416 = sadd.s32 %s27, %s26
          %s417 = smul.addr %s416, 128
          %s418 = scalar_lea.hbm %s2, %s417
          %s420 = sshll.u32 %s409, 4
          %s421 = int_to_ptr.vmem [resolvable:$true] %s420
          %423 = dma.vmem_to_hbm [thread:$0]  %s421, 128, %s418, %s406
        $region40: #{tpu_custom_call.1} parent=27 // pred_fallthru
          _
      $region28: #{tpu_custom_call.1} parent=5 // pred_fallthru
        _
      %p424 = scmp.le.s32.totalorder 2, %s17
      // Predicated region
      $region41: #{tpu_custom_call.1} parent=5 // pred_check
        %p425 = pneg %p424
      $region42: #{tpu_custom_call.1} parent=5 // pred_check_branch
        %427 = sbr.rel (%p425) target = $region44
      $region43: #{tpu_custom_call.1} parent=5 // pred_region
        %s428 = ssub.s32 %s17, 2
        // Predicated region
        $region45: #{tpu_custom_call.1} parent=43 // pred_check
          %p429 = pneg %p116
        $region46: #{tpu_custom_call.1} parent=43 // pred_check_branch
          %431 = sbr.rel (%p429) target = $region48
        $region47: #{tpu_custom_call.1} parent=43 // pred_region
          %s432 = sand.u32 %s101, 1
          %s433 = scalar_lea.sflag [#allocation4], %s432
          %s434 = sand.u32 %s101, 1
          %s435 = smul.addr %s434, 8
          %s436 = scalar_lea.vmem [#allocation7], %s435
          %437 = dma.done %s433, 128
        $region48: #{tpu_custom_call.1} parent=43 // pred_fallthru
          _
      $region44: #{tpu_custom_call.1} parent=5 // pred_fallthru
        _
    $region6: #{tpu_custom_call.1} parent=1 // loop_footer
      %s21 = sadd.s32 1, %s17
    $region7: #{tpu_custom_call.1} parent=1 // loop_footer_branch
      %16 = sbr.rel target = $region3
    $region8: #{tpu_custom_call.1} parent=1 // loop_exit
      _
    %438 = vsyncpa [#allocation3], 1
    %s439 = scalar_lea.sflag [#allocation3], 1
    %440 = vsyncpa %s439, 1
    %441 = vsyncpa [#allocation6], 1
    %s442 = scalar_lea.sflag [#allocation6], 1
    %443 = vsyncpa %s442, 1
    %444 = vsyncpa [#allocation4], 1
    %s445 = scalar_lea.sflag [#allocation4], 1
    %446 = vsyncpa %s445, 1

</llo_original>
